<compile_context>
chip_gen: v7x
topology: tpu7x:2x2x1
jax: 0.10.0
libtpu: 0.0.40
codegen_flags: <defaults>
</compile_context>

<pallas_src>
import functools

import jax
import jax.numpy as jnp
from jax.experimental import pallas as pl
from jax.experimental.pallas import tpu as pltpu


def _round_up(x, m):
    return -(-x // m) * m


def _vmem_block_bytes(shape, dtype):
    """Approximate VMEM footprint of one block ((sublane, lane) tile padding)."""
    itemsize = jnp.dtype(dtype).itemsize
    dims = list(shape)
    if len(dims) >= 1:
        dims[-1] = _round_up(dims[-1], 128)
    if len(dims) >= 2:
        dims[-2] = _round_up(dims[-2], 8 * max(1, 4 // itemsize))
    n = itemsize
    for d in dims:
        n *= d
    return n


def _vmem_budget_bytes():
    """Usable VMEM derived from the running chip (conservative headroom)."""
    try:
        cap = int(pltpu.get_tpu_info().vmem_capacity_bytes)
    except Exception:
        cap = 64 * 2**20  # assume the smallest generation (v7x) if query fails
    cap = max(cap, 32 * 2**20)
    return cap - max(8 * 2**20, cap // 4)


# --------------------------------------------------------------------------
# Fused single-pass kernel: pool + FC/ReLU/FC/sigmoid + channel scale.
# --------------------------------------------------------------------------
def _se_fused_kernel(x_ref, w1t_ref, w2t_ref, gamma_ref, o_ref, *, inv_hw):
    # x_ref/o_ref: (Bt, C, HW); w1t: (C, C_red); w2t: (C_red, C); gamma: (1,) SMEM.
    x = x_ref[...]                                            # single load, native dtype

    # Squeeze: global average pool; f32 accumulation fused into the reduction.
    y = jnp.sum(x, axis=-1, dtype=jnp.float32) * inv_hw       # (Bt, C) f32

    # Excitation (tiny matmuls; MXU/EUP cost is negligible vs. the HBM stream).
    h = jnp.dot(y.astype(w1t_ref.dtype), w1t_ref[...],
                preferred_element_type=jnp.float32)           # (Bt, C_red)
    h = jnp.maximum(h, 0.0)
    s = jnp.dot(h.astype(w2t_ref.dtype), w2t_ref[...],
                preferred_element_type=jnp.float32)           # (Bt, C)
    s = jax.nn.sigmoid(s)

    # out = x * (1 + gamma * s); scale rounded to the storage dtype so the
    # store path stays in x's native dtype (no full-tile f32 temporary).
    scale = (1.0 + gamma_ref[0] * s).astype(o_ref.dtype)      # (Bt, C)
    o_ref[...] = x * scale[:, :, None]


# --------------------------------------------------------------------------
# Fallback pass 1: chunked pool over HW + excitation -> per-(b,c) scale.
# --------------------------------------------------------------------------
def _se_pool_excite_kernel(x_ref, w1t_ref, w2t_ref, gamma_ref, scale_ref, acc_ref,
                           *, inv_hw, hw, hw_t):
    h_idx = pl.program_id(1)

    @pl.when(h_idx == 0)
    def _():
        acc_ref[...] = jnp.zeros_like(acc_ref)

    x = x_ref[...]                                            # (1, C, hw_t)
    # Mask lanes past the true spatial extent (ragged last chunk may read OOB).
    lane = jax.lax.broadcasted_iota(jnp.int32, x.shape, 2)
    x = jnp.where(h_idx * hw_t + lane < hw, x, jnp.zeros_like(x))
    acc_ref[...] += jnp.sum(x, axis=-1, dtype=jnp.float32)    # (1, C)

    @pl.when(h_idx == pl.num_programs(1) - 1)
    def _():
        y = acc_ref[...] * inv_hw
        h = jnp.maximum(jnp.dot(y.astype(w1t_ref.dtype), w1t_ref[...],
                                preferred_element_type=jnp.float32), 0.0)
        s = jax.nn.sigmoid(jnp.dot(h.astype(w2t_ref.dtype), w2t_ref[...],
                                   preferred_element_type=jnp.float32))
        scale_ref[...] = (1.0 + gamma_ref[0] * s)[:, :, None]  # (1, C, 1) f32


# --------------------------------------------------------------------------
# Fallback pass 2: out = x * scale, streamed over HW chunks.
# --------------------------------------------------------------------------
def _se_scale_kernel(x_ref, scale_ref, o_ref):
    # x/o: (1, C, hw_t); scale: (1, C, 1) broadcasts over the lane axis.
    o_ref[...] = x_ref[...] * scale_ref[...].astype(o_ref.dtype)


def se_layer(x_nchw, w1, w2, gamma):
    """SELayer forward. x: (B,C,H,W); w1: (C_red,C); w2: (C,C_red); gamma: (1,)."""
    B, C, H, W = x_nchw.shape
    C_red = w1.shape[0]
    HW = H * W
    x3 = x_nchw.reshape(B, C, HW)          # no pad / slice: full-extent lane blocks
    itemsize = jnp.dtype(x3.dtype).itemsize

    # Resident weights: keep in x's dtype when x is sub-32-bit (halves VMEM,
    # native MXU rate); accumulation is f32 via preferred_element_type.
    w_dtype = x3.dtype if itemsize < 4 else jnp.float32
    w1_t = w1.T.astype(w_dtype)            # (C, C_red) == Linear(C, C_red).weight.T
    w2_t = w2.T.astype(w_dtype)            # (C_red, C) == Linear(C_red, C).weight.T
    gamma = gamma.astype(jnp.float32).reshape((1,))

    budget = _vmem_budget_bytes()
    slack = 2 * 2**20
    per_b_tile = _vmem_block_bytes((C, HW), x3.dtype)
    weight_vmem = (_vmem_block_bytes((C, C_red), w_dtype)
                   + _vmem_block_bytes((C_red, C), w_dtype))
    weight_hbm = 2 * C * C_red * jnp.dtype(w_dtype).itemsize
    flops_fc = 4 * B * C * C_red

    def fused_need(bt):
        # double-buffered in + out tiles, resident weights, slack
        return 4 * bt * per_b_tile + 2 * weight_vmem + slack

    if fused_need(1) <= budget:
        # ---- Fused single-pass path: 1 read + 1 write of x. ----------------
        bt = 1
        min_steps = min(B, 4)   # >= ~4 grid steps: v7x megacore (2 TC) + pipeline
        for d in range(1, B + 1):
            if B % d:
                continue
            if B // d < min_steps or fused_need(d) > budget:
                break
            bt = d
            if d * per_b_tile >= 2 * 2**20:   # tile big enough for DMA roofline
                break

        out3 = pl.pallas_call(
            functools.partial(_se_fused_kernel, inv_hw=1.0 / HW),
            out_shape=jax.ShapeDtypeStruct((B, C, HW), x3.dtype),
            grid=(B // bt,),
            in_specs=[
                pl.BlockSpec((bt, C, HW), lambda b: (b, 0, 0)),       # x (streamed)
                pl.BlockSpec((C, C_red), lambda b: (0, 0)),           # w1^T (resident)
                pl.BlockSpec((C_red, C), lambda b: (0, 0)),           # w2^T (resident)
                pl.BlockSpec(memory_space=pltpu.MemorySpace.SMEM),    # gamma scalar
            ],
            out_specs=pl.BlockSpec((bt, C, HW), lambda b: (b, 0, 0)),
            compiler_params=pltpu.CompilerParams(
                dimension_semantics=("parallel",),
                vmem_limit_bytes=int(min(budget, max(fused_need(bt), 32 * 2**20))),
            ),
            cost_estimate=pl.CostEstimate(
                flops=int(2 * B * C * HW + flops_fc),
                transcendentals=int(B * C),
                bytes_accessed=int(2 * B * C * HW * itemsize + weight_hbm + 4),
            ),
        )(x3, w1_t, w2_t, gamma)
        return out3.reshape(B, C, H, W)

    # ---- Fallback: one batch element exceeds the VMEM budget (large C*HW,
    # e.g. on v7x's 64 MiB).  Two chunked passes over HW; one extra read of x.
    col = _vmem_block_bytes((C, 128), x3.dtype)            # one 128-lane slab
    max_cols = max(1, (budget - 2 * weight_vmem - slack) // (6 * col))
    if max_cols * 128 >= HW:
        hw_t, n_hw = HW, 1
    else:
        hw_t = int(max_cols) * 128
        n_hw = -(-HW // hw_t)

    # Pass 1: pooled mean + excitation -> per-(b, c) scale (tiny output).
    scale = pl.pallas_call(
        functools.partial(_se_pool_excite_kernel, inv_hw=1.0 / HW, hw=HW, hw_t=hw_t),
        out_shape=jax.ShapeDtypeStruct((B, C, 1), jnp.float32),
        grid=(B, n_hw),
        in_specs=[
            pl.BlockSpec((1, C, hw_t), lambda b, h: (b, 0, h)),
            pl.BlockSpec((C, C_red), lambda b, h: (0, 0)),
            pl.BlockSpec((C_red, C), lambda b, h: (0, 0)),
            pl.BlockSpec(memory_space=pltpu.MemorySpace.SMEM),
        ],
        out_specs=pl.BlockSpec((1, C, 1), lambda b, h: (b, 0, 0)),
        scratch_shapes=[pltpu.VMEM((1, C), jnp.float32)],
        compiler_params=pltpu.CompilerParams(
            dimension_semantics=("parallel", "arbitrary"),
            vmem_limit_bytes=int(budget),
        ),
        cost_estimate=pl.CostEstimate(
            flops=int(B * C * HW + flops_fc),
            transcendentals=int(B * C),
            bytes_accessed=int(B * C * HW * itemsize + weight_hbm + B * C * 4),
        ),
    )(x3, w1_t, w2_t, gamma)

    # Pass 2: out = x * scale (streamed; 1 read + 1 write of x).
    out3 = pl.pallas_call(
        _se_scale_kernel,
        out_shape=jax.ShapeDtypeStruct((B, C, HW), x3.dtype),
        grid=(B, n_hw),
        in_specs=[
            pl.BlockSpec((1, C, hw_t), lambda b, h: (b, 0, h)),
            pl.BlockSpec((1, C, 1), lambda b, h: (b, 0, 0)),
        ],
        out_specs=pl.BlockSpec((1, C, hw_t), lambda b, h: (b, 0, h)),
        compiler_params=pltpu.CompilerParams(
            dimension_semantics=("parallel", "parallel"),
            vmem_limit_bytes=int(budget),
        ),
        cost_estimate=pl.CostEstimate(
            flops=int(B * C * HW),
            transcendentals=0,
            bytes_accessed=int(2 * B * C * HW * itemsize + B * C * 4),
        ),
    )(x3, scale)
    return out3.reshape(B, C, H, W)


def se_layer_ref(x, w1, w2, gamma):
    """Pure-JAX reference mirroring the PyTorch forward."""
    y = jnp.mean(x, axis=(2, 3))                            # (B, C)
    y = jnp.maximum(y @ w1.T, 0.0)                          # (B, C_red)
    y = jax.nn.sigmoid(y @ w2.T)                            # (B, C)
    return x * (1.0 + gamma[0] * y[:, :, None, None])


if __name__ == "__main__":
    B, C, H, W = 2, 4, 16, 16
    reduction = 2
    C_red = C // reduction

    key = jax.random.PRNGKey(0)
    kx, k1, k2 = jax.random.split(key, 3)

    x = jax.random.normal(kx, (B, C, H, W), dtype=jnp.float32)
    # nn.Linear(C, C_red, bias=False).weight has shape (C_red, C)
    w1 = jax.random.normal(k1, (C_red, C), dtype=jnp.float32) * 0.5
    # nn.Linear(C_red, C, bias=False).weight has shape (C, C_red)
    w2 = jax.random.normal(k2, (C, C_red), dtype=jnp.float32) * 0.5
    # Module __init__ uses torch.zeros(1); use a nonzero value so the excitation
    # branch actually contributes to the output under test.
    gamma = jnp.array([0.5], dtype=jnp.float32)

    out = se_layer(x, w1, w2, gamma)
    jax.block_until_ready(out)

    ref = se_layer_ref(x, w1, w2, gamma)
    assert out.shape == (B, C, H, W)
    assert jnp.allclose(out, ref, atol=1e-5, rtol=1e-5), "mismatch vs reference"

    print("KERNEL_OK")
</pallas_src>

<mosaic_0001>
module attributes {stable_mosaic.version = 11 : i64} {
  func.func @_se_fused_kernel(%arg0: i32, %arg1: memref<1x4x256xf32, #tpu.memory_space<vmem>>, %arg2: memref<4x2xf32, #tpu.memory_space<vmem>>, %arg3: memref<2x4xf32, #tpu.memory_space<vmem>>, %arg4: memref<1xf32, #tpu.memory_space<smem>>, %arg5: memref<1x4x256xf32, #tpu.memory_space<vmem>>) attributes {dimension_semantics = [#tpu.dimension_semantics<parallel>], iteration_bounds = array<i64: 2>, scalar_prefetch = 0 : i64, scratch_operands = 0 : i64, tpu.core_type = #tpu.core_type<tc>, window_params = [{transform_indices = @transform_0, window_bounds = array<i64: 1, 4, 256>}, {pipeline_mode = #tpu.pipeline_mode<synchronous>, transform_indices = @transform_1, window_bounds = array<i64: 4, 2>}, {pipeline_mode = #tpu.pipeline_mode<synchronous>, transform_indices = @transform_2, window_bounds = array<i64: 2, 4>}, {transform_indices = @transform_3, window_bounds = array<i64: 1>}, {transform_indices = @transform_4, window_bounds = array<i64: 1, 4, 256>}]} {
    %c0 = arith.constant 0 : index
    %c0_0 = arith.constant 0 : index
    %c0_1 = arith.constant 0 : index
    %0 = vector.load %arg1[%c0, %c0_0, %c0_1] : memref<1x4x256xf32, #tpu.memory_space<vmem>>, vector<1x4x256xf32>
    %cst = arith.constant dense<0.000000e+00> : vector<1x4xf32>
    %1 = vector.multi_reduction <add>, %0, %cst [2] : vector<1x4x256xf32> to vector<1x4xf32>
    %cst_2 = arith.constant 3.906250e-03 : f32
    %2 = vector.broadcast %cst_2 : f32 to vector<1x4xf32>
    %3 = arith.mulf %1, %2 : vector<1x4xf32>
    %c0_3 = arith.constant 0 : index
    %c0_4 = arith.constant 0 : index
    %4 = vector.load %arg2[%c0_3, %c0_4] : memref<4x2xf32, #tpu.memory_space<vmem>>, vector<4x2xf32>
    %cst_5 = arith.constant dense<0.000000e+00> : vector<1x2xf32>
    %5 = tpu.matmul %3, %4, %cst_5 {dimension_numbers = #tpu.dot_dimension_numbers<[1], [0], [0], [1], [0, 0, 1, 1], [], []>} : vector<1x4xf32>, vector<4x2xf32>, vector<1x2xf32> -> vector<1x2xf32>
    %cst_6 = arith.constant 0.000000e+00 : f32
    %6 = vector.broadcast %cst_6 : f32 to vector<1x2xf32>
    %7 = arith.maximumf %5, %6 : vector<1x2xf32>
    %c0_7 = arith.constant 0 : index
    %c0_8 = arith.constant 0 : index
    %8 = vector.load %arg3[%c0_7, %c0_8] : memref<2x4xf32, #tpu.memory_space<vmem>>, vector<2x4xf32>
    %cst_9 = arith.constant dense<0.000000e+00> : vector<1x4xf32>
    %9 = tpu.matmul %7, %8, %cst_9 {dimension_numbers = #tpu.dot_dimension_numbers<[1], [0], [0], [1], [0, 0, 1, 1], [], []>} : vector<1x2xf32>, vector<2x4xf32>, vector<1x4xf32> -> vector<1x4xf32>
    %10 = arith.negf %9 : vector<1x4xf32>
    %11 = math.exp %10 : vector<1x4xf32>
    %cst_10 = arith.constant 1.000000e+00 : f32
    %12 = vector.broadcast %cst_10 : f32 to vector<1x4xf32>
    %13 = arith.addf %12, %11 : vector<1x4xf32>
    %14 = arith.divf %12, %13 : vector<1x4xf32>
    %c0_11 = arith.constant 0 : index
    %15 = memref.load %arg4[%c0_11] : memref<1xf32, #tpu.memory_space<smem>>
    %16 = vector.broadcast %15 : f32 to vector<1x4xf32>
    %17 = arith.mulf %16, %14 : vector<1x4xf32>
    %cst_12 = arith.constant 1.000000e+00 : f32
    %18 = vector.broadcast %cst_12 : f32 to vector<1x4xf32>
    %19 = arith.addf %18, %17 : vector<1x4xf32>
    %20 = vector.shape_cast %19 : vector<1x4xf32> to vector<1x4x1xf32>
    %21 = vector.broadcast %20 : vector<1x4x1xf32> to vector<1x4x256xf32>
    %22 = arith.mulf %0, %21 : vector<1x4x256xf32>
    %c0_13 = arith.constant 0 : index
    %c0_14 = arith.constant 0 : index
    %c0_15 = arith.constant 0 : index
    %23 = vector.load %arg5[%c0_13, %c0_14, %c0_15] : memref<1x4x256xf32, #tpu.memory_space<vmem>>, vector<1x4x256xf32>
    tpu.vector_store %arg5[%c0_13, %c0_14, %c0_15], %22 {strides = array<i32>} : memref<1x4x256xf32, #tpu.memory_space<vmem>>, vector<1x4x256xf32>,
    return
  }
  func.func @transform_0(%arg0: i32) -> (i32, i32, i32) {
    %c0_i32 = arith.constant 0 : i32
    %c0_i32_0 = arith.constant 0 : i32
    %c0_i32_1 = arith.constant 0 : i32
    return %arg0, %c0_i32, %c0_i32_0 : i32, i32, i32
  }
  func.func @transform_1(%arg0: i32) -> (i32, i32) {
    %c0_i32 = arith.constant 0 : i32
    %c0_i32_0 = arith.constant 0 : i32
    %c0_i32_1 = arith.constant 0 : i32
    return %c0_i32, %c0_i32_0 : i32, i32
  }
  func.func @transform_2(%arg0: i32) -> (i32, i32) {
    %c0_i32 = arith.constant 0 : i32
    %c0_i32_0 = arith.constant 0 : i32
    %c0_i32_1 = arith.constant 0 : i32
    return %c0_i32, %c0_i32_0 : i32, i32
  }
  func.func @transform_3(%arg0: i32) -> i32 {
    %c0_i32 = arith.constant 0 : i32
    %c0_i32_0 = arith.constant 0 : i32
    return %c0_i32 : i32
  }
  func.func @transform_4(%arg0: i32) -> (i32, i32, i32) {
    %c0_i32 = arith.constant 0 : i32
    %c0_i32_0 = arith.constant 0 : i32
    %c0_i32_1 = arith.constant 0 : i32
    return %arg0, %c0_i32, %c0_i32_0 : i32, i32, i32
  }
}

</mosaic_0001>

<llo_original>
// kernel: tpu_custom_call.1
$region0: #{tpu_custom_call.1}
  #allocation0 [shape = 'u32[]', space=smem, size = 0x4, offset = 0x4, fixed_abs, tag = 'smem constant byte address 0x4 - core index']
  #allocation1 [shape = 'u32[144,128]{1,0:T(1,128)}', space=vmem, size = 0x12000, scoped, tag = 'internal scratch']
  #allocation2 [shape = 'f32[1]{0:T(128)S(6)}', space=smem, size = 0x200, scoped, tag = 'scoped memory for tpu_custom_call.1']
  %s0 = inlined_call_operand.hbm [shape: f32[2,4,256], index: 0, kind: input, shape index: {}]
  %s1 = inlined_call_operand.vmem [shape: f32[4,2], index: 1, kind: input, shape index: {}]
  %s2 = inlined_call_operand.vmem [shape: f32[2,4], index: 2, kind: input, shape index: {}]
  %s3 = inlined_call_operand.<no memory space> [shape: f32[1], index: 3, kind: input, shape index: {}]
  %s4 = inlined_call_operand.hbm [shape: f32[2,4,256], index: 4, kind: output, shape index: {}]
  %s5 = sld [smem:[#allocation0]]
  $region53: #{tpu_custom_call.1} parent=0
    _
  %s7 = ssub.s32 1, %s5
  %s8 = scalar_select 0, %s7, %s5
  %9 = sst [smem:[#allocation2]] %s3
  $region1: #{tpu_custom_call.1} parent=0
    #allocation3 [shape = 'u8[8192]{0}', space=vmem, size = 0x2000, scoped, tag = 'input window, operand 0']
    #allocation4 [shape = 's32[2]{0}', space=sflag, size = 0x8, scoped, tag = 'scoped memory for tpu_custom_call.1']
    #allocation5 [shape = 's32[2]{0}', space=sflag, size = 0x8, scoped, tag = 'scoped memory for tpu_custom_call.1']
    #allocation6 [shape = 'u8[8192]{0}', space=vmem, size = 0x2000, scoped, tag = 'output window, operand 0']
    %10 = vsyncpa [#allocation4], 0
    %s11 = scalar_lea.sflag [#allocation4], 1
    %12 = vsyncpa %s11, 0
    %13 = vsyncpa [#allocation5], 0
    %s14 = scalar_lea.sflag [#allocation5], 1
    %15 = vsyncpa %s14, 0
    loop: start=0, step=1, limit=4
    $region2: #{tpu_custom_call.1} parent=1 // loop_pre_header
      _
    $region3: #{tpu_custom_call.1} parent=1 // loop_header
      %s17 = sphi 0, %s21
      %p18 = scmp.ge.s32.totalorder %s17, 4
      %s27 = sphi 0, %s29
      %s30 = sphi 0, %s27
      %s31 = sphi 0, %s30
      %s47 = sphi 0, %s31
      %s51 = sphi 0, %s51
      %s53 = sphi 0, %s51
      %s54 = sphi 0, %s53
      %s68 = sphi 0, %s54
      %s72 = sphi 0, %s72
      %s74 = sphi 0, %s72
      %s75 = sphi 0, %s74
      %s89 = sphi 0, %s75
      %s93 = sphi 0, %s93
      %s95 = sphi 0, %s93
      %s96 = sphi 0, %s95
      %s110 = sphi 0, %s96
      %s116 = sphi 0, %s118
      %s119 = sphi 0, %s116
      %s120 = sphi 0, %s119
      %s136 = sphi 0, %s120
    $region4: #{tpu_custom_call.1} parent=1 // loop_header_branch
      %20 = sbr.rel (%p18) target = $region8
    $region5: #{tpu_custom_call.1} parent=1 // loop_body
      %s22 = ssub.s32 %s17, 1
      %s23 = ssub.s32 %s17, 2
      %s24 = sadd.s32 %s17, 1
      %s25 = ssub.s32 %s17, %s24
      %p26 = scmp.eq.s32.totalorder %s25, 0
      %s28 = sadd.s32 %s27, 1
      %s29 = scalar_select %p26, %s27, %s28
      %p32 = pneg %p26
      %p33 = scmp.eq.s32.totalorder %s17, 1
      %p34 = por %p32, %p33
      %p35 = scmp.ne.s32.totalorder %s27, %s30
      %p36 = scmp.eq.s32.totalorder %s17, 0
      %p37 = por %p35, %p36
      %p38 = scmp.ne.s32.totalorder %s27, %s30
      %p39 = scmp.eq.s32.totalorder %s22, 1
      %p40 = por %p38, %p39
      %p41 = scmp.ne.s32.totalorder %s30, %s31
      %p42 = scmp.eq.s32.totalorder %s22, 0
      %p43 = por %p41, %p42
      %p44 = scmp.ne.s32.totalorder %s30, %s31
      %p45 = scmp.eq.s32.totalorder %s23, 1
      %p46 = por %p44, %p45
      %p48 = scmp.ne.s32.totalorder %s31, %s47
      %p49 = scmp.eq.s32.totalorder %s23, 0
      %p50 = por %p48, %p49
      %s52 = sadd.s32 %s51, 1
      %p55 = scmp.eq.s32.totalorder %s17, 1
      %p56 = scmp.ne.s32.totalorder %s51, %s53
      %p57 = scmp.eq.s32.totalorder %s17, 0
      %p58 = por %p56, %p57
      %p59 = scmp.ne.s32.totalorder %s51, %s53
      %p60 = scmp.eq.s32.totalorder %s22, 1
      %p61 = por %p59, %p60
      %p62 = scmp.ne.s32.totalorder %s53, %s54
      %p63 = scmp.eq.s32.totalorder %s22, 0
      %p64 = por %p62, %p63
      %p65 = scmp.ne.s32.totalorder %s53, %s54
      %p66 = scmp.eq.s32.totalorder %s23, 1
      %p67 = por %p65, %p66
      %p69 = scmp.ne.s32.totalorder %s54, %s68
      %p70 = scmp.eq.s32.totalorder %s23, 0
      %p71 = por %p69, %p70
      %s73 = sadd.s32 %s72, 1
      %p76 = scmp.eq.s32.totalorder %s17, 1
      %p77 = scmp.ne.s32.totalorder %s72, %s74
      %p78 = scmp.eq.s32.totalorder %s17, 0
      %p79 = por %p77, %p78
      %p80 = scmp.ne.s32.totalorder %s72, %s74
      %p81 = scmp.eq.s32.totalorder %s22, 1
      %p82 = por %p80, %p81
      %p83 = scmp.ne.s32.totalorder %s74, %s75
      %p84 = scmp.eq.s32.totalorder %s22, 0
      %p85 = por %p83, %p84
      %p86 = scmp.ne.s32.totalorder %s74, %s75
      %p87 = scmp.eq.s32.totalorder %s23, 1
      %p88 = por %p86, %p87
      %p90 = scmp.ne.s32.totalorder %s75, %s89
      %p91 = scmp.eq.s32.totalorder %s23, 0
      %p92 = por %p90, %p91
      %s94 = sadd.s32 %s93, 1
      %p97 = scmp.eq.s32.totalorder %s17, 1
      %p98 = scmp.ne.s32.totalorder %s93, %s95
      %p99 = scmp.eq.s32.totalorder %s17, 0
      %p100 = por %p98, %p99
      %p101 = scmp.ne.s32.totalorder %s93, %s95
      %p102 = scmp.eq.s32.totalorder %s22, 1
      %p103 = por %p101, %p102
      %p104 = scmp.ne.s32.totalorder %s95, %s96
      %p105 = scmp.eq.s32.totalorder %s22, 0
      %p106 = por %p104, %p105
      %p107 = scmp.ne.s32.totalorder %s95, %s96
      %p108 = scmp.eq.s32.totalorder %s23, 1
      %p109 = por %p107, %p108
      %p111 = scmp.ne.s32.totalorder %s96, %s110
      %p112 = scmp.eq.s32.totalorder %s23, 0
      %p113 = por %p111, %p112
      %s114 = ssub.s32 %s17, %s24
      %p115 = scmp.eq.s32.totalorder %s114, 0
      %s117 = sadd.s32 %s116, 1
      %s118 = scalar_select %p115, %s116, %s117
      %p121 = pneg %p115
      %p122 = scmp.eq.s32.totalorder %s17, 1
      %p123 = por %p121, %p122
      %p124 = scmp.ne.s32.totalorder %s116, %s119
      %p125 = scmp.eq.s32.totalorder %s17, 0
      %p126 = por %p124, %p125
      %p127 = scmp.ne.s32.totalorder %s116, %s119
      %p128 = scmp.eq.s32.totalorder %s22, 1
      %p129 = por %p127, %p128
      %p130 = scmp.ne.s32.totalorder %s119, %s120
      %p131 = scmp.eq.s32.totalorder %s22, 0
      %p132 = por %p130, %p131
      %p133 = scmp.ne.s32.totalorder %s119, %s120
      %p134 = scmp.eq.s32.totalorder %s23, 1
      %p135 = por %p133, %p134
      %p137 = scmp.ne.s32.totalorder %s120, %s136
      %p138 = scmp.eq.s32.totalorder %s23, 0
      %p139 = por %p137, %p138
      %p140 = scmp.le.s32.totalorder 1, %s17
      %p141 = scmp.lt.s32.totalorder %s17, 3
      %p142 = pnand %p140, %p141
      %p143 = pneg %p142
      // Predicated region
      $region9: #{tpu_custom_call.1} parent=5 // pred_check
        _
      $region10: #{tpu_custom_call.1} parent=5 // pred_check_branch
        %145 = sbr.rel (%p142) target = $region12
      $region11: #{tpu_custom_call.1} parent=5 // pred_region
        %s146 = ssub.s32 %s17, 1
        // Predicated region
        $region13: #{tpu_custom_call.1} parent=11 // pred_check
          %p147 = pneg %p64
        $region14: #{tpu_custom_call.1} parent=11 // pred_check_branch
          %149 = sbr.rel (%p147) target = $region16
        $region15: #{tpu_custom_call.1} parent=11 // pred_region
          _
        $region16: #{tpu_custom_call.1} parent=11 // pred_fallthru
          _
        // Predicated region
        $region17: #{tpu_custom_call.1} parent=11 // pred_check
          %p150 = pneg %p85
        $region18: #{tpu_custom_call.1} parent=11 // pred_check_branch
          %152 = sbr.rel (%p150) target = $region20
        $region19: #{tpu_custom_call.1} parent=11 // pred_region
          _
        $region20: #{tpu_custom_call.1} parent=11 // pred_fallthru
          _
        // Predicated region
        $region21: #{tpu_custom_call.1} parent=11 // pred_check
          %p153 = pneg %p106
        $region22: #{tpu_custom_call.1} parent=11 // pred_check_branch
          %155 = sbr.rel (%p153) target = $region24
        $region23: #{tpu_custom_call.1} parent=11 // pred_region
          _
        $region24: #{tpu_custom_call.1} parent=11 // pred_fallthru
          _
      $region12: #{tpu_custom_call.1} parent=5 // pred_fallthru
        _
      %p156 = scmp.lt.s32.totalorder %s17, 2
      // Predicated region
      $region25: #{tpu_custom_call.1} parent=5 // pred_check
        %p157 = pneg %p156
      $region26: #{tpu_custom_call.1} parent=5 // pred_check_branch
        %159 = sbr.rel (%p157) target = $region28
      $region27: #{tpu_custom_call.1} parent=5 // pred_region
        // Predicated region
        $region29: #{tpu_custom_call.1} parent=27 // pred_check
          %p160 = pneg %p37
        $region30: #{tpu_custom_call.1} parent=27 // pred_check_branch
          %162 = sbr.rel (%p160) target = $region32
        $region31: #{tpu_custom_call.1} parent=27 // pred_region
          %s163 = sand.u32 %s27, 1
          %s164 = scalar_lea.sflag [#allocation4], %s163
          %s165 = sand.u32 %s27, 1
          %s166 = smul.addr %s165, 8
          %s167 = scalar_lea.vmem [#allocation3], %s166
          %s169 = ssub.s32 128, 128
          %170 = vsyncadd %s164, %s169
          %s171 = smul.addr %s17, 2
          %s172 = smul.addr %s171, 64
          %s173 = scalar_lea.hbm %s0, %s172
          %s175 = sshll.u32 %s167, 4
          %s176 = int_to_ptr.vmem [resolvable:$true] %s175
          %178 = dma.hbm_to_vmem [thread:$0]  %s173, 128, %s176, %s164
        $region32: #{tpu_custom_call.1} parent=27 // pred_fallthru
          _
      $region28: #{tpu_custom_call.1} parent=5 // pred_fallthru
        _
      %p179 = scmp.le.s32.totalorder 1, %s17
      %p180 = scmp.lt.s32.totalorder %s17, 3
      %p181 = pnand %p179, %p180
      %p182 = pneg %p181
      // Predicated region
      $region33: #{tpu_custom_call.1} parent=5 // pred_check
        _
      $region34: #{tpu_custom_call.1} parent=5 // pred_check_branch
        %184 = sbr.rel (%p181) target = $region36
      $region35: #{tpu_custom_call.1} parent=5 // pred_region
        %s185 = ssub.s32 %s17, 1
        %s186 = sand.u32 %s30, 1
        %s187 = scalar_lea.sflag [#allocation4], %s186
        %s188 = sand.u32 %s30, 1
        %s189 = smul.addr %s188, 8
        %s190 = scalar_lea.vmem [#allocation3], %s189
        // Predicated region
        $region37: #{tpu_custom_call.1} parent=35 // pred_check
          %p191 = pneg %p43
        $region38: #{tpu_custom_call.1} parent=35 // pred_check_branch
          %193 = sbr.rel (%p191) target = $region40
        $region39: #{tpu_custom_call.1} parent=35 // pred_region
          %194 = dma.done %s187, 128
        $region40: #{tpu_custom_call.1} parent=35 // pred_fallthru
          _
        %s195 = sand.u32 %s30, 1
        %s196 = scalar_lea.sflag [#allocation4], %s195
        %s197 = sand.u32 %s30, 1
        %s198 = smul.addr %s197, 8
        %s199 = scalar_lea.vmem [#allocation3], %s198
        %p200 = pneg %p43
        %p201 = pneg %p40
        %p202 = pneg %p64
        %p203 = pneg %p61
        %p204 = pneg %p85
        %p205 = pneg %p82
        %p206 = pneg %p106
        %p207 = pneg %p103
        %p208 = pneg %p132
        %p209 = pneg %p129
        %s210 = sand.u32 %s119, 1
        %s211 = scalar_lea.sflag [#allocation5], %s210
        %s212 = sand.u32 %s119, 1
        %s213 = smul.addr %s212, 8
        %s214 = scalar_lea.vmem [#allocation6], %s213
        %v215 = vld [vmem:[%s190] sm:$0xff]
        %v217 = vcombine.high %v215, %v215
        %vm219 = vcmask 1043456
        %v220 = vsel %vm219, %v215, 0.0
        %v221 = vsel %vm219, %v217, 0.0
        %v222 = vadd.f32 %v220, %v221
        %223 = vadd.xlane.f32.xlu0 %v222
        %v224 = vpop.xlane.xlu0 %223
        %v225 = vmul.f32 %v224, 0.00390625
        %v226 = vld [vmem:[%s1] sm:$0xf]
        %v228 = vlaneseq
        %v229 = vand.u32 %v228, 127
        %v230 = vlaneseq
        %v231 = vshrl.u32 %v230, 7
        %v232 = vsub.s32 %v229, %v231
        %v233 = vrot.slane %v225, %v232
        %vm234 = vcmask 31744
        %v235 = vsel %vm234, %v233, 0
        %v238 = vsel %vm219, %v226, 0
        %240 = vmatprep.subr.mxu0 0.0
        %241 = vmatpush1.msra.mxu0 %v238
        %242 = vmatprep.subr.mxu0 0.0
        %243 = vmatpush1.msra.mxu0 0.0
        %244 = vmatprep.subr.mxu0 0.0
        %245 = vmatpush1.msra.mxu0 0.0
        %246 = vmatprep.subr.mxu0 0.0
        %247 = vmatpush1.msra.mxu0 0.0
        %248 = vmatprep.subr.mxu0 0.0
        %249 = vmatpush1.msra.mxu0 0.0
        %250 = vmatprep.subr.mxu0 0.0
        %251 = vmatpush1.msra.mxu0 0.0
        %252 = vmatprep.subr.mxu0 0.0
        %253 = vmatpush1.msra.mxu0 0.0
        %254 = vmatprep.subr.mxu0 0.0
        %255 = vmatpush1.msra.mxu0 0.0
        %256 = vmatprep.subr.mxu0 0.0
        %257 = vmatpush1.msra.mxu0 0.0
        %258 = vmatprep.subr.mxu0 0.0
        %259 = vmatpush1.msra.mxu0 0.0
        %260 = vmatprep.subr.mxu0 0.0
        %261 = vmatpush1.msra.mxu0 0.0
        %262 = vmatprep.subr.mxu0 0.0
        %263 = vmatpush1.msra.mxu0 0.0
        %264 = vmatprep.subr.mxu0 0.0
        %265 = vmatpush1.msra.mxu0 0.0
        %266 = vmatprep.subr.mxu0 0.0
        %267 = vmatpush1.msra.mxu0 0.0
        %268 = vmatprep.subr.mxu0 0.0
        %269 = vmatpush1.msra.mxu0 0.0
        %270 = vmatprep.subr.mxu0 0.0
        %271 = vmatpush1.msra.mxu0 0.0
        %272 = vmatprep.subr.mxu0 0.0
        %273 = vmatpush1.msra.mxu0 0.0
        %274 = vmatprep.subr.mxu0 0.0
        %275 = vmatpush1.msra.mxu0 0.0
        %276 = vmatprep.subr.mxu0 0.0
        %277 = vmatpush1.msra.mxu0 0.0
        %278 = vmatprep.subr.mxu0 0.0
        %279 = vmatpush1.msra.mxu0 0.0
        %280 = vmatprep.subr.mxu0 0.0
        %281 = vmatpush1.msra.mxu0 0.0
        %282 = vmatprep.subr.mxu0 0.0
        %283 = vmatpush1.msra.mxu0 0.0
        %284 = vmatprep.subr.mxu0 0.0
        %285 = vmatpush1.msra.mxu0 0.0
        %286 = vmatprep.subr.mxu0 0.0
        %287 = vmatpush1.msra.mxu0 0.0
        %288 = vmatprep.subr.mxu0 0.0
        %289 = vmatpush1.msra.mxu0 0.0
        %290 = vmatprep.subr.mxu0 0.0
        %291 = vmatpush1.msra.mxu0 0.0
        %292 = vmatprep.subr.mxu0 0.0
        %293 = vmatpush1.msra.mxu0 0.0
        %294 = vmatprep.subr.mxu0 0.0
        %295 = vmatpush1.msra.mxu0 0.0
        %296 = vmatprep.subr.mxu0 0.0
        %297 = vmatpush1.msra.mxu0 0.0
        %298 = vmatprep.subr.mxu0 0.0
        %299 = vmatpush1.msra.mxu0 0.0
        %300 = vmatprep.subr.mxu0 0.0
        %301 = vmatpush1.msra.mxu0 0.0
        %302 = vmatprep.subr.mxu0 0.0
        %303 = vmatpush1.msra.mxu0 0.0
        %304 = vmatprep.mubr.f32.mxu0 0.0
        %305 = vmatmul.mubr.f32.gmra.mrb[0].mxu0 %v235
        %v306 = vpop.f32.mrb[0].mxu0
        %v307 = vadd.f32 0.0, %v306
        %v308 = vpop.f32.mrb[0].mxu0
        %309 = vdwg.mxu0
        %v310 = vmax.f32 %v307, 0.0
        %v311 = vld [vmem:[%s2] sm:$0x3]
        %vm312 = vcmask 15360
        %v314 = vsel %vm312, %v310, 0
        %vm316 = vcmask 1041408
        %v318 = vsel %vm316, %v311, 0
        %320 = vmatprep.subr.mxu0 0.0
        %321 = vmatpush1.msra.mxu0 %v318
        %322 = vmatprep.subr.mxu0 0.0
        %323 = vmatpush1.msra.mxu0 0.0
        %324 = vmatprep.subr.mxu0 0.0
        %325 = vmatpush1.msra.mxu0 0.0
        %326 = vmatprep.subr.mxu0 0.0
        %327 = vmatpush1.msra.mxu0 0.0
        %328 = vmatprep.subr.mxu0 0.0
        %329 = vmatpush1.msra.mxu0 0.0
        %330 = vmatprep.subr.mxu0 0.0
        %331 = vmatpush1.msra.mxu0 0.0
        %332 = vmatprep.subr.mxu0 0.0
        %333 = vmatpush1.msra.mxu0 0.0
        %334 = vmatprep.subr.mxu0 0.0
        %335 = vmatpush1.msra.mxu0 0.0
        %336 = vmatprep.subr.mxu0 0.0
        %337 = vmatpush1.msra.mxu0 0.0
        %338 = vmatprep.subr.mxu0 0.0
        %339 = vmatpush1.msra.mxu0 0.0
        %340 = vmatprep.subr.mxu0 0.0
        %341 = vmatpush1.msra.mxu0 0.0
        %342 = vmatprep.subr.mxu0 0.0
        %343 = vmatpush1.msra.mxu0 0.0
        %344 = vmatprep.subr.mxu0 0.0
        %345 = vmatpush1.msra.mxu0 0.0
        %346 = vmatprep.subr.mxu0 0.0
        %347 = vmatpush1.msra.mxu0 0.0
        %348 = vmatprep.subr.mxu0 0.0
        %349 = vmatpush1.msra.mxu0 0.0
        %350 = vmatprep.subr.mxu0 0.0
        %351 = vmatpush1.msra.mxu0 0.0
        %352 = vmatprep.subr.mxu0 0.0
        %353 = vmatpush1.msra.mxu0 0.0
        %354 = vmatprep.subr.mxu0 0.0
        %355 = vmatpush1.msra.mxu0 0.0
        %356 = vmatprep.subr.mxu0 0.0
        %357 = vmatpush1.msra.mxu0 0.0
        %358 = vmatprep.subr.mxu0 0.0
        %359 = vmatpush1.msra.mxu0 0.0
        %360 = vmatprep.subr.mxu0 0.0
        %361 = vmatpush1.msra.mxu0 0.0
        %362 = vmatprep.subr.mxu0 0.0
        %363 = vmatpush1.msra.mxu0 0.0
        %364 = vmatprep.subr.mxu0 0.0
        %365 = vmatpush1.msra.mxu0 0.0
        %366 = vmatprep.subr.mxu0 0.0
        %367 = vmatpush1.msra.mxu0 0.0
        %368 = vmatprep.subr.mxu0 0.0
        %369 = vmatpush1.msra.mxu0 0.0
        %370 = vmatprep.subr.mxu0 0.0
        %371 = vmatpush1.msra.mxu0 0.0
        %372 = vmatprep.subr.mxu0 0.0
        %373 = vmatpush1.msra.mxu0 0.0
        %374 = vmatprep.subr.mxu0 0.0
        %375 = vmatpush1.msra.mxu0 0.0
        %376 = vmatprep.subr.mxu0 0.0
        %377 = vmatpush1.msra.mxu0 0.0
        %378 = vmatprep.subr.mxu0 0.0
        %379 = vmatpush1.msra.mxu0 0.0
        %380 = vmatprep.subr.mxu0 0.0
        %381 = vmatpush1.msra.mxu0 0.0
        %382 = vmatprep.subr.mxu0 0.0
        %383 = vmatpush1.msra.mxu0 0.0
        %384 = vmatprep.mubr.f32.mxu0 0.0
        %385 = vmatmul.mubr.f32.gmra.mrb[0].mxu0 %v314
        %v386 = vpop.f32.mrb[0].mxu0
        %v387 = vadd.f32 0.0, %v386
        %v388 = vpop.f32.mrb[0].mxu0
        %389 = vdwg.mxu0
        %v390 = vxor.u32 %v387, 2147483648
        %v391 = vmul.f32 %v390, 1.442695
        %v392 = vpow.pop %v391
        %v393 = vadd.f32 %v392, 1.0
        %v394 = vrcp.pop %v393
        %v395 = vmul.f32 1.0, %v394
        %s396 = sld [smem:[#allocation2]]
        %v397 = vstv %s396
        %v398 = vmul.f32 %v397, %v395
        %v399 = vadd.f32 %v398, 1.0
        %v400 = vlaneseq
        %v401 = vshrl.u32 %v400, 7
        %v402 = vsub.s32 0, %v401
        %v403 = vrot.slane %v399, %v402
        %405 = vbcast.lane.b32.xlu0 %v403, 256
        %v406 = vpop.permute.xlu0 %405
        %v409 = vunpack.c.l.s4 839922192
        %v410 = vunpack.c.0.s8 %v409
        %v411 = vlaneseq
        %v412 = vshrl.u32 %v411, 7
        %v413 = vsub.s32 %v410, %v412
        %v414 = vrot.slane %v406, %v413
        %v416 = vmul.f32 %v215, %v414
        %417 = vst [vmem:[%s214] sm:$0xff] %v416
        %s418 = sand.u32 %s119, 1
        %s419 = scalar_lea.sflag [#allocation5], %s418
        %s420 = sand.u32 %s119, 1
        %s421 = smul.addr %s420, 8
        %s422 = scalar_lea.vmem [#allocation6], %s421
        // Predicated region
        $region41: #{tpu_custom_call.1} parent=35 // pred_check
          %p423 = pneg %p129
        $region42: #{tpu_custom_call.1} parent=35 // pred_check_branch
          %425 = sbr.rel (%p423) target = $region44
        $region43: #{tpu_custom_call.1} parent=35 // pred_region
          %s427 = ssub.s32 128, 128
          %428 = vsyncadd %s419, %s427
          %s429 = smul.addr %s22, 2
          %s430 = smul.addr %s429, 64
          %s431 = scalar_lea.hbm %s4, %s430
          %s433 = sshll.u32 %s422, 4
          %s434 = int_to_ptr.vmem [resolvable:$true] %s433
          %436 = dma.vmem_to_hbm [thread:$0]  %s434, 128, %s431, %s419
        $region44: #{tpu_custom_call.1} parent=35 // pred_fallthru
          _
      $region36: #{tpu_custom_call.1} parent=5 // pred_fallthru
        _
      %p437 = scmp.le.s32.totalorder 2, %s17
      // Predicated region
      $region45: #{tpu_custom_call.1} parent=5 // pred_check
        %p438 = pneg %p437
      $region46: #{tpu_custom_call.1} parent=5 // pred_check_branch
        %440 = sbr.rel (%p438) target = $region48
      $region47: #{tpu_custom_call.1} parent=5 // pred_region
        %s441 = ssub.s32 %s17, 2
        // Predicated region
        $region49: #{tpu_custom_call.1} parent=47 // pred_check
          %p442 = pneg %p135
        $region50: #{tpu_custom_call.1} parent=47 // pred_check_branch
          %444 = sbr.rel (%p442) target = $region52
        $region51: #{tpu_custom_call.1} parent=47 // pred_region
          %s445 = sand.u32 %s120, 1
          %s446 = scalar_lea.sflag [#allocation5], %s445
          %s447 = sand.u32 %s120, 1
          %s448 = smul.addr %s447, 8
          %s449 = scalar_lea.vmem [#allocation6], %s448
          %450 = dma.done %s446, 128
        $region52: #{tpu_custom_call.1} parent=47 // pred_fallthru
          _
      $region48: #{tpu_custom_call.1} parent=5 // pred_fallthru
        _
    $region6: #{tpu_custom_call.1} parent=1 // loop_footer
      %s21 = sadd.s32 1, %s17
    $region7: #{tpu_custom_call.1} parent=1 // loop_footer_branch
      %16 = sbr.rel target = $region3
    $region8: #{tpu_custom_call.1} parent=1 // loop_exit
      _
    %451 = vsyncpa [#allocation4], 1
    %s452 = scalar_lea.sflag [#allocation4], 1
    %453 = vsyncpa %s452, 1
    %454 = vsyncpa [#allocation5], 1
    %s455 = scalar_lea.sflag [#allocation5], 1
    %456 = vsyncpa %s455, 1

</llo_original>
